<compile_context>
chip_gen: v5e
topology: v5e:2x2
jax: 0.10.0
libtpu: 0.0.40
codegen_flags: <defaults>
</compile_context>

<pallas_src>
import functools

import jax
import jax.numpy as jnp
from jax.experimental import pallas as pl
from jax.experimental.pallas import tpu as pltpu


def _round_up(v, m):
    return (v + m - 1) // m * m


def _spmm_kernel(a_ref, x_ref, o_ref):
    """One (TM, C_pad) output tile of out = A @ x; K-reduction over grid axis 1.

    The output tile (f32) doubles as the accumulator: its block index does not
    depend on k, so it stays resident in VMEM for the whole reduction and is
    flushed to HBM only once.
    """
    k = pl.program_id(1)

    @pl.when(k == 0)
    def _():
        o_ref[...] = jnp.zeros_like(o_ref)

    # A is stored bf16 (exact for integer edge counts); accumulate in f32.
    a = a_ref[...].astype(jnp.float32)
    o_ref[...] += jnp.dot(a, x_ref[...], preferred_element_type=jnp.float32)


def _spmm_layer(adj_bf16, x_f32, tm, tk):
    """One GIN layer: out = A @ x, tiled and software-pipelined."""
    n_pad, _ = adj_bf16.shape
    _, c_pad = x_f32.shape
    grid = (n_pad // tm, n_pad // tk)
    return pl.pallas_call(
        _spmm_kernel,
        out_shape=jax.ShapeDtypeStruct((n_pad, c_pad), jnp.float32),
        grid_spec=pltpu.PrefetchScalarGridSpec(
            num_scalar_prefetch=0,
            grid=grid,
            in_specs=[
                pl.BlockSpec((tm, tk), lambda i, k: (i, k)),      # A[dst, src]
                pl.BlockSpec((tk, c_pad), lambda i, k: (k, 0)),   # x[src, :]
            ],
            out_specs=pl.BlockSpec((tm, c_pad), lambda i, k: (i, 0)),
        ),
        compiler_params=pltpu.CompilerParams(
            dimension_semantics=("parallel", "arbitrary"),
        ),
    )(adj_bf16, x_f32)


@functools.partial(jax.jit, static_argnames=("num_layers",))
def gin_forward(x, edge_index, edge_attr, num_layers):
    """Forward pass of GIN. edge_attr accepted but unused (as in the reference)."""
    del edge_attr  # message() returns x_j only -> edge_attr never used
    n, c = x.shape

    # Lane-dense channel dim; MXU/VREG-aligned node dim.
    c_pad = _round_up(max(c, 1), 128)
    if n <= 512:
        n_pad = _round_up(n, 128)
        tm = tk = n_pad                        # single aligned tile
    else:
        tm = tk = 512                          # 128-aligned, ~0.5 MiB bf16 A tile
        n_pad = _round_up(n, 512)

    src = edge_index[0]
    dst = edge_index[1]

    # Dense adjacency (scatter-add of edge multiplicities). bf16 is bit-exact
    # for integer counts up to 256, so results are unchanged vs f32 A.
    adj = jnp.zeros((n_pad, n_pad), jnp.float32).at[dst, src].add(1.0)
    adj = adj.astype(jnp.bfloat16)
    # TODO(synk): for large, sparse graphs replace the dense O(N^2) adjacency
    # with a CSR scalar-prefetch gather SpMM (PrefetchScalarGridSpec) so HBM
    # traffic scales with E instead of N^2.

    # x = x.to(self.mlp[0].weight.dtype) -> float32; zero-pad to (n_pad, c_pad).
    xp = jnp.zeros((n_pad, c_pad), jnp.float32).at[:n, :c].set(
        x.astype(jnp.float32)
    )

    # conv1 + (num_layers - 2) convs + conv2, Python-unrolled (static count).
    for _ in range(num_layers):
        xp = _spmm_layer(adj, xp, tm, tk)

    return xp[:n, :c]


def init_gin_params(key, in_c, hidden_c, out_c, num_layers):
    """Per-layer MLP params (shapes from __init__). NOT used by the forward
    pass — the reference module's propagate() never invokes the MLP. Kept only
    for structural fidelity."""
    dims = (
        [(in_c, hidden_c)]
        + [(hidden_c, hidden_c)] * (num_layers - 2)
        + [(hidden_c, out_c)]
    )
    params = []
    for (ci, co) in dims:
        key, k1, k2 = jax.random.split(key, 3)
        params.append(
            {
                "lin1_w": jax.random.normal(k1, (co, ci), jnp.float32) * 0.1,
                "lin1_b": jnp.zeros((co,), jnp.float32),
                "lin2_w": jax.random.normal(k2, (co, co), jnp.float32) * 0.1,
                "lin2_b": jnp.zeros((co,), jnp.float32),
            }
        )
    return params


if __name__ == "__main__":
    key = jax.random.PRNGKey(0)
    k_x, k_e, k_a, k_p = jax.random.split(key, 4)

    # Small graph consistent with the module's forward.
    num_nodes = 16
    num_edges = 40
    in_channels = 8
    hidden_channels = 32
    out_channels = 16
    num_layers = 3  # conv1 + (num_layers-2) convs + conv2

    x = jax.random.normal(k_x, (num_nodes, in_channels), jnp.float32)
    edge_index = jax.random.randint(k_e, (2, num_edges), 0, num_nodes, jnp.int32)
    edge_attr = jax.random.normal(k_a, (num_edges, 4), jnp.float32)

    # Unused in forward (see note above), initialized deterministically anyway.
    _params = init_gin_params(
        k_p, in_channels, hidden_channels, out_channels, num_layers
    )

    out = gin_forward(x, edge_index, edge_attr, num_layers)
    out = jax.block_until_ready(out)

    # Pure-JAX reference of the same semantics: out = A^num_layers @ x.
    adj_ref = (
        jnp.zeros((num_nodes, num_nodes), jnp.float32)
        .at[edge_index[1], edge_index[0]]
        .add(1.0)
    )
    ref = x.astype(jnp.float32)
    for _ in range(num_layers):
        ref = adj_ref @ ref

    assert out.shape == (num_nodes, in_channels)
    max_err = float(jnp.max(jnp.abs(out - ref)))
    assert jnp.allclose(out, ref, atol=1e-3, rtol=1e-3), max_err

    print("KERNEL_OK")
</pallas_src>

<mosaic_0001>
module attributes {stable_mosaic.version = 11 : i64} {
  func.func @_spmm_kernel(%arg0: i32, %arg1: i32, %arg2: memref<128x128xbf16, #tpu.memory_space<vmem>>, %arg3: memref<128x128xf32, #tpu.memory_space<vmem>>, %arg4: memref<128x128xf32, #tpu.memory_space<vmem>>) attributes {dimension_semantics = [#tpu.dimension_semantics<parallel>, #tpu.dimension_semantics<arbitrary>], iteration_bounds = array<i64: 1, 1>, scalar_prefetch = 0 : i64, scratch_operands = 0 : i64, tpu.core_type = #tpu.core_type<tc>, window_params = [{transform_indices = @transform_0, window_bounds = array<i64: 128, 128>}, {transform_indices = @transform_1, window_bounds = array<i64: 128, 128>}, {transform_indices = @transform_2, window_bounds = array<i64: 128, 128>}]} {
    %c0_i32 = arith.constant 0 : i32
    %0 = arith.cmpi eq, %arg1, %c0_i32 : i32
    %1 = arith.extui %0 : i1 to i32
    %c0_i32_0 = arith.constant 0 : i32
    %2 = arith.cmpi ne, %1, %c0_i32_0 : i32
    scf.if %2 {
      %cst_8 = arith.constant 0.000000e+00 : f32
      %10 = vector.broadcast %cst_8 : f32 to vector<128x128xf32>
      %c0_9 = arith.constant 0 : index
      %c0_10 = arith.constant 0 : index
      %11 = vector.load %arg4[%c0_9, %c0_10] : memref<128x128xf32, #tpu.memory_space<vmem>>, vector<128x128xf32>
      tpu.vector_store %arg4[%c0_9, %c0_10], %10 {strides = array<i32>} : memref<128x128xf32, #tpu.memory_space<vmem>>, vector<128x128xf32>,
    } else {
    }
    %c0 = arith.constant 0 : index
    %c0_1 = arith.constant 0 : index
    %3 = vector.load %arg2[%c0, %c0_1] : memref<128x128xbf16, #tpu.memory_space<vmem>>, vector<128x128xbf16>
    %4 = arith.extf %3 : vector<128x128xbf16> to vector<128x128xf32>
    %c0_2 = arith.constant 0 : index
    %c0_3 = arith.constant 0 : index
    %5 = vector.load %arg4[%c0_2, %c0_3] : memref<128x128xf32, #tpu.memory_space<vmem>>, vector<128x128xf32>
    %c0_4 = arith.constant 0 : index
    %c0_5 = arith.constant 0 : index
    %6 = vector.load %arg3[%c0_4, %c0_5] : memref<128x128xf32, #tpu.memory_space<vmem>>, vector<128x128xf32>
    %cst = arith.constant dense<0.000000e+00> : vector<128x128xf32>
    %7 = tpu.matmul %4, %6, %cst {dimension_numbers = #tpu.dot_dimension_numbers<[1], [0], [0], [1], [0, 0, 1, 1], [], []>} : vector<128x128xf32>, vector<128x128xf32>, vector<128x128xf32> -> vector<128x128xf32>
    %8 = arith.addf %5, %7 : vector<128x128xf32>
    %c0_6 = arith.constant 0 : index
    %c0_7 = arith.constant 0 : index
    %9 = vector.load %arg4[%c0_6, %c0_7] : memref<128x128xf32, #tpu.memory_space<vmem>>, vector<128x128xf32>
    tpu.vector_store %arg4[%c0_6, %c0_7], %8 {strides = array<i32>} : memref<128x128xf32, #tpu.memory_space<vmem>>, vector<128x128xf32>,
    return
  }
  func.func @transform_0(%arg0: i32, %arg1: i32) -> (i32, i32) {
    %c0_i32 = arith.constant 0 : i32
    return %arg0, %arg1 : i32, i32
  }
  func.func @transform_1(%arg0: i32, %arg1: i32) -> (i32, i32) {
    %c0_i32 = arith.constant 0 : i32
    %c0_i32_0 = arith.constant 0 : i32
    return %arg1, %c0_i32 : i32, i32
  }
  func.func @transform_2(%arg0: i32, %arg1: i32) -> (i32, i32) {
    %c0_i32 = arith.constant 0 : i32
    %c0_i32_0 = arith.constant 0 : i32
    return %arg0, %c0_i32 : i32, i32
  }
}

</mosaic_0001>

<llo_original>
// kernel: gin_forward.3
$region0: #{gin_forward.3}
  #allocation0 [shape = 'u32[]', space=smem, size = 0x4, offset = 0x4, fixed_abs, tag = 'smem constant byte address 0x4 - core index']
  #allocation1 [shape = 'u32[72,128]{1,0:T(1,128)}', space=vmem, size = 0x9000, scoped, tag = 'internal scratch']
  %s0 = inlined_call_operand.vmem [shape: bf16[128,128], index: 0, kind: input, shape index: {}]
  %s1 = inlined_call_operand.vmem [shape: f32[128,128], index: 1, kind: input, shape index: {}]
  %s2 = inlined_call_operand.vmem [shape: f32[128,128], index: 2, kind: output, shape index: {}]
  %s3 = sld [smem:[#allocation0]]
  $region22: #{gin_forward.3} parent=0
    _
  %s5 = ssub.s32 1, %s3
  %s6 = scalar_select 0, %s5, %s3
  // Predicated region
  $region2: #{gin_forward.3} parent=0 // pred_check
    _
  $region3: #{gin_forward.3} parent=0 // pred_check_branch
    %8 = sbr.rel (0) target = $region5
  $region4: #{gin_forward.3} parent=0 // pred_region
    _
  $region5: #{gin_forward.3} parent=0 // pred_fallthru
    _
  // Predicated region
  $region6: #{gin_forward.3} parent=0 // pred_check
    _
  $region7: #{gin_forward.3} parent=0 // pred_check_branch
    %10 = sbr.rel (0) target = $region9
  $region8: #{gin_forward.3} parent=0 // pred_region
    _
  $region9: #{gin_forward.3} parent=0 // pred_fallthru
    _
  %p11 = scmp.eq.s32.totalorder 0, 0
  // Predicated region
  $region10: #{gin_forward.3} parent=0 // pred_check
    %p12 = pneg %p11
  $region11: #{gin_forward.3} parent=0 // pred_check_branch
    %14 = sbr.rel (%p12) target = $region13
  $region12: #{gin_forward.3} parent=0 // pred_region
    %15 = vst [vmem:[%s2] sm:$0xff] 0.0
    %16 = vst [vmem:[%s2 + $0x8] sm:$0xff] 0.0
    %17 = vst [vmem:[%s2 + $0x10] sm:$0xff] 0.0
    %18 = vst [vmem:[%s2 + $0x18] sm:$0xff] 0.0
    %19 = vst [vmem:[%s2 + $0x20] sm:$0xff] 0.0
    %20 = vst [vmem:[%s2 + $0x28] sm:$0xff] 0.0
    %21 = vst [vmem:[%s2 + $0x30] sm:$0xff] 0.0
    %22 = vst [vmem:[%s2 + $0x38] sm:$0xff] 0.0
    %23 = vst [vmem:[%s2 + $0x40] sm:$0xff] 0.0
    %24 = vst [vmem:[%s2 + $0x48] sm:$0xff] 0.0
    %25 = vst [vmem:[%s2 + $0x50] sm:$0xff] 0.0
    %26 = vst [vmem:[%s2 + $0x58] sm:$0xff] 0.0
    %27 = vst [vmem:[%s2 + $0x60] sm:$0xff] 0.0
    %28 = vst [vmem:[%s2 + $0x68] sm:$0xff] 0.0
    %29 = vst [vmem:[%s2 + $0x70] sm:$0xff] 0.0
    %30 = vst [vmem:[%s2 + $0x78] sm:$0xff] 0.0
  $region13: #{gin_forward.3} parent=0 // pred_fallthru
    _
  %v31 = vld [vmem:[%s0] sm:$0xf]
  %v32 = vld [vmem:[%s0 + $0x4] sm:$0xf]
  %v33 = vld [vmem:[%s0 + $0x8] sm:$0xf]
  %v34 = vld [vmem:[%s0 + $0xc] sm:$0xf]
  %v35 = vld [vmem:[%s0 + $0x10] sm:$0xf]
  %v36 = vld [vmem:[%s0 + $0x14] sm:$0xf]
  %v37 = vld [vmem:[%s0 + $0x18] sm:$0xf]
  %v38 = vld [vmem:[%s0 + $0x1c] sm:$0xf]
  %v39 = vld [vmem:[%s0 + $0x20] sm:$0xf]
  %v40 = vld [vmem:[%s0 + $0x24] sm:$0xf]
  %v41 = vld [vmem:[%s0 + $0x28] sm:$0xf]
  %v42 = vld [vmem:[%s0 + $0x2c] sm:$0xf]
  %v43 = vld [vmem:[%s0 + $0x30] sm:$0xf]
  %v44 = vld [vmem:[%s0 + $0x34] sm:$0xf]
  %v45 = vld [vmem:[%s0 + $0x38] sm:$0xf]
  %v46 = vld [vmem:[%s0 + $0x3c] sm:$0xf]
  %v47 = vunpack.c.l.bf16 %v31
  %v48 = vunpack.c.l.bf16 %v32
  %v49 = vunpack.c.l.bf16 %v33
  %v50 = vunpack.c.l.bf16 %v34
  %v51 = vunpack.c.l.bf16 %v35
  %v52 = vunpack.c.l.bf16 %v36
  %v53 = vunpack.c.l.bf16 %v37
  %v54 = vunpack.c.l.bf16 %v38
  %v55 = vunpack.c.l.bf16 %v39
  %v56 = vunpack.c.l.bf16 %v40
  %v57 = vunpack.c.l.bf16 %v41
  %v58 = vunpack.c.l.bf16 %v42
  %v59 = vunpack.c.l.bf16 %v43
  %v60 = vunpack.c.l.bf16 %v44
  %v61 = vunpack.c.l.bf16 %v45
  %v62 = vunpack.c.l.bf16 %v46
  %v63 = vld [vmem:[%s2] sm:$0xff]
  %v64 = vld [vmem:[%s2 + $0x8] sm:$0xff]
  %v65 = vld [vmem:[%s2 + $0x10] sm:$0xff]
  %v66 = vld [vmem:[%s2 + $0x18] sm:$0xff]
  %v67 = vld [vmem:[%s2 + $0x20] sm:$0xff]
  %v68 = vld [vmem:[%s2 + $0x28] sm:$0xff]
  %v69 = vld [vmem:[%s2 + $0x30] sm:$0xff]
  %v70 = vld [vmem:[%s2 + $0x38] sm:$0xff]
  %v71 = vld [vmem:[%s2 + $0x40] sm:$0xff]
  %v72 = vld [vmem:[%s2 + $0x48] sm:$0xff]
  %v73 = vld [vmem:[%s2 + $0x50] sm:$0xff]
  %v74 = vld [vmem:[%s2 + $0x58] sm:$0xff]
  %v75 = vld [vmem:[%s2 + $0x60] sm:$0xff]
  %v76 = vld [vmem:[%s2 + $0x68] sm:$0xff]
  %v77 = vld [vmem:[%s2 + $0x70] sm:$0xff]
  %v78 = vld [vmem:[%s2 + $0x78] sm:$0xff]
  %v79 = vld [vmem:[%s1] sm:$0xff]
  %v80 = vld [vmem:[%s1 + $0x8] sm:$0xff]
  %v81 = vld [vmem:[%s1 + $0x10] sm:$0xff]
  %v82 = vld [vmem:[%s1 + $0x18] sm:$0xff]
  %v83 = vld [vmem:[%s1 + $0x20] sm:$0xff]
  %v84 = vld [vmem:[%s1 + $0x28] sm:$0xff]
  %v85 = vld [vmem:[%s1 + $0x30] sm:$0xff]
  %v86 = vld [vmem:[%s1 + $0x38] sm:$0xff]
  %v87 = vld [vmem:[%s1 + $0x40] sm:$0xff]
  %v88 = vld [vmem:[%s1 + $0x48] sm:$0xff]
  %v89 = vld [vmem:[%s1 + $0x50] sm:$0xff]
  %v90 = vld [vmem:[%s1 + $0x58] sm:$0xff]
  %v91 = vld [vmem:[%s1 + $0x60] sm:$0xff]
  %v92 = vld [vmem:[%s1 + $0x68] sm:$0xff]
  %v93 = vld [vmem:[%s1 + $0x70] sm:$0xff]
  %v94 = vld [vmem:[%s1 + $0x78] sm:$0xff]
  %95 = vmatpush.msra.mxu0 %v94
  %96 = vmatpush.msra.mxu0 %v93
  %97 = vmatpush.msra.mxu0 %v92
  %98 = vmatpush.msra.mxu0 %v91
  %99 = vmatpush.msra.mxu0 %v90
  %100 = vmatpush.msra.mxu0 %v89
  %101 = vmatpush.msra.mxu0 %v88
  %102 = vmatpush.msra.mxu0 %v87
  %103 = vmatpush.msra.mxu0 %v86
  %104 = vmatpush.msra.mxu0 %v85
  %105 = vmatpush.msra.mxu0 %v84
  %106 = vmatpush.msra.mxu0 %v83
  %107 = vmatpush.msra.mxu0 %v82
  %108 = vmatpush.msra.mxu0 %v81
  %109 = vmatpush.msra.mxu0 %v80
  %110 = vmatpush.msra.mxu0 %v79
  %111 = vmatmul.f32.gmra.mxu0 %v47
  %v112 = vpop.f32.mrf.mxu0
  %v113 = vadd.f32 0.0, %v112
  %114 = vmatmul.f32.gmra.mxu0 %v48
  %v115 = vpop.f32.mrf.mxu0
  %v116 = vadd.f32 0.0, %v115
  %117 = vmatmul.f32.gmra.mxu0 %v49
  %v118 = vpop.f32.mrf.mxu0
  %v119 = vadd.f32 0.0, %v118
  %120 = vmatmul.f32.gmra.mxu0 %v50
  %v121 = vpop.f32.mrf.mxu0
  %v122 = vadd.f32 0.0, %v121
  %123 = vmatmul.f32.gmra.mxu0 %v51
  %v124 = vpop.f32.mrf.mxu0
  %v125 = vadd.f32 0.0, %v124
  %126 = vmatmul.f32.gmra.mxu0 %v52
  %v127 = vpop.f32.mrf.mxu0
  %v128 = vadd.f32 0.0, %v127
  %129 = vmatmul.f32.gmra.mxu0 %v53
  %v130 = vpop.f32.mrf.mxu0
  %v131 = vadd.f32 0.0, %v130
  %132 = vmatmul.f32.gmra.mxu0 %v54
  %v133 = vpop.f32.mrf.mxu0
  %v134 = vadd.f32 0.0, %v133
  %135 = vmatmul.f32.gmra.mxu0 %v55
  %v136 = vpop.f32.mrf.mxu0
  %v137 = vadd.f32 0.0, %v136
  %138 = vmatmul.f32.gmra.mxu0 %v56
  %v139 = vpop.f32.mrf.mxu0
  %v140 = vadd.f32 0.0, %v139
  %141 = vmatmul.f32.gmra.mxu0 %v57
  %v142 = vpop.f32.mrf.mxu0
  %v143 = vadd.f32 0.0, %v142
  %144 = vmatmul.f32.gmra.mxu0 %v58
  %v145 = vpop.f32.mrf.mxu0
  %v146 = vadd.f32 0.0, %v145
  %147 = vmatmul.f32.gmra.mxu0 %v59
  %v148 = vpop.f32.mrf.mxu0
  %v149 = vadd.f32 0.0, %v148
  %150 = vmatmul.f32.gmra.mxu0 %v60
  %v151 = vpop.f32.mrf.mxu0
  %v152 = vadd.f32 0.0, %v151
  %153 = vmatmul.f32.gmra.mxu0 %v61
  %v154 = vpop.f32.mrf.mxu0
  %v155 = vadd.f32 0.0, %v154
  %156 = vmatmul.f32.gmra.mxu0 %v62
  %v157 = vpop.f32.mrf.mxu0
  %v158 = vadd.f32 0.0, %v157
  %159 = vdwg.mxu0
  %v160 = vadd.f32 %v63, %v113
  %v161 = vadd.f32 %v64, %v116
  %v162 = vadd.f32 %v65, %v119
  %v163 = vadd.f32 %v66, %v122
  %v164 = vadd.f32 %v67, %v125
  %v165 = vadd.f32 %v68, %v128
  %v166 = vadd.f32 %v69, %v131
  %v167 = vadd.f32 %v70, %v134
  %v168 = vadd.f32 %v71, %v137
  %v169 = vadd.f32 %v72, %v140
  %v170 = vadd.f32 %v73, %v143
  %v171 = vadd.f32 %v74, %v146
  %v172 = vadd.f32 %v75, %v149
  %v173 = vadd.f32 %v76, %v152
  %v174 = vadd.f32 %v77, %v155
  %v175 = vadd.f32 %v78, %v158
  %176 = vst [vmem:[%s2] sm:$0xff] %v160
  %177 = vst [vmem:[%s2 + $0x8] sm:$0xff] %v161
  %178 = vst [vmem:[%s2 + $0x10] sm:$0xff] %v162
  %179 = vst [vmem:[%s2 + $0x18] sm:$0xff] %v163
  %180 = vst [vmem:[%s2 + $0x20] sm:$0xff] %v164
  %181 = vst [vmem:[%s2 + $0x28] sm:$0xff] %v165
  %182 = vst [vmem:[%s2 + $0x30] sm:$0xff] %v166
  %183 = vst [vmem:[%s2 + $0x38] sm:$0xff] %v167
  %184 = vst [vmem:[%s2 + $0x40] sm:$0xff] %v168
  %185 = vst [vmem:[%s2 + $0x48] sm:$0xff] %v169
  %186 = vst [vmem:[%s2 + $0x50] sm:$0xff] %v170
  %187 = vst [vmem:[%s2 + $0x58] sm:$0xff] %v171
  %188 = vst [vmem:[%s2 + $0x60] sm:$0xff] %v172
  %189 = vst [vmem:[%s2 + $0x68] sm:$0xff] %v173
  %190 = vst [vmem:[%s2 + $0x70] sm:$0xff] %v174
  %191 = vst [vmem:[%s2 + $0x78] sm:$0xff] %v175
  // Predicated region
  $region14: #{gin_forward.3} parent=0 // pred_check
    _
  $region15: #{gin_forward.3} parent=0 // pred_check_branch
    %193 = sbr.rel (0) target = $region17
  $region16: #{gin_forward.3} parent=0 // pred_region
    _
  $region17: #{gin_forward.3} parent=0 // pred_fallthru
    _
  // Predicated region
  $region18: #{gin_forward.3} parent=0 // pred_check
    _
  $region19: #{gin_forward.3} parent=0 // pred_check_branch
    %195 = sbr.rel (0) target = $region21
  $region20: #{gin_forward.3} parent=0 // pred_region
    _
  $region21: #{gin_forward.3} parent=0 // pred_fallthru
    _

</llo_original>
